<compile_context>
chip_gen: v7x
topology: tpu7x:2x2x1
jax: 0.10.0
libtpu: 0.0.40
codegen_flags: <defaults>
</compile_context>

<pallas_src>
import jax
import jax.numpy as jnp
from jax.experimental import pallas as pl
from jax.experimental.pallas import tpu as pltpu


NEG_INF = -1e30  # finite "minus infinity": keeps exp()/max() NaN-free on padded cols


def _round_up(x, m):
    return (x + m - 1) // m * m


def generator_kernel(x_ref, w_ref, b_ref, o_ref, m_ref, l_ref):
    # x_ref: (tm, H)  w_ref: (H, tn)  b_ref: (1, tn) f32  o_ref: (tm, tn)
    # m_ref / l_ref: (tm, 1) f32 scratch (running max -> logsumexp, running sum of exp)
    p = pl.program_id(1)           # 0 = logsumexp pass, 1 = write pass
    j = pl.program_id(2)           # vocab tile
    nv = pl.num_programs(2)

    # Linear tile: native-dtype operands on the MXU, f32 accumulation.
    logits = jnp.dot(x_ref[...], w_ref[...],
                     preferred_element_type=jnp.float32) + b_ref[...]

    @pl.when(jnp.logical_and(p == 0, j == 0))
    def _init():
        m_ref[...] = jnp.full_like(m_ref, NEG_INF)
        l_ref[...] = jnp.zeros_like(l_ref)

    @pl.when(p == 0)
    def _online_lse():
        m_old = m_ref[...]
        m_new = jnp.maximum(m_old, jnp.max(logits, axis=-1, keepdims=True))
        l_ref[...] = (l_ref[...] * jnp.exp(m_old - m_new)
                      + jnp.sum(jnp.exp(logits - m_new), axis=-1, keepdims=True))
        m_ref[...] = m_new

    @pl.when(jnp.logical_and(p == 0, j == nv - 1))
    def _finalize():
        # m_ref now holds the full-row logsumexp.
        m_ref[...] = m_ref[...] + jnp.log(l_ref[...])

    @pl.when(p == 1)
    def _write():
        o_ref[...] = (logits - m_ref[...]).astype(o_ref.dtype)


def generator_forward(x, weight, bias, *, tm=256, tn=512, out_dtype=None):
    """Fused y = log_softmax(x @ weight + bias, axis=-1).

    x: [B, T, H], weight: [H, V], bias: [V] -> log-probs [B, T, V] (out_dtype,
    default = x.dtype; pass jnp.bfloat16 to halve output HBM traffic).
    """
    B, T, H = x.shape
    Hw, V = weight.shape
    assert Hw == H, "weight must be [H, V]"
    if out_dtype is None:
        out_dtype = x.dtype
    M = B * T

    # Tile sizes: 16-aligned rows (bf16 sublane packing), lane-dense vocab tiles.
    tm = max(16, min(tm, _round_up(M, 16)))
    tm = _round_up(tm, 16)
    tn = max(128, min(tn, _round_up(V, 128)))
    tn = _round_up(tn, 128)

    M_pad = _round_up(M, tm)
    V_pad = _round_up(V, tn)

    x2 = x.reshape(M, H)
    if M_pad != M:
        x2 = jnp.pad(x2, ((0, M_pad - M), (0, 0)))
    w = weight
    b = bias.reshape(1, V).astype(jnp.float32)
    if V_pad != V:
        w = jnp.pad(w, ((0, 0), (0, V_pad - V)))
        # Padded vocab columns get a huge negative bias: they never win the max
        # and contribute exp(...) == 0 to the logsumexp.
        b = jnp.pad(b, ((0, 0), (0, V_pad - V)), constant_values=NEG_INF)

    nm = M_pad // tm
    nv = V_pad // tn

    # Explicit VMEM budget: double-buffered x / w / bias / out tiles + scratch, headroom.
    xb = 2 * tm * H * jnp.dtype(x.dtype).itemsize
    wb = 2 * H * tn * jnp.dtype(w.dtype).itemsize
    bb = 2 * tn * 4
    ob = 2 * tm * tn * jnp.dtype(out_dtype).itemsize
    sb = 2 * tm * 4
    vmem_limit = min(max(int(1.5 * (xb + wb + bb + ob + sb)) + (4 << 20), 32 << 20),
                     128 << 20)

    cost = pl.CostEstimate(
        flops=int(2 * 2 * M_pad * H * V_pad),        # two matmul passes over V tiles
        transcendentals=int(M_pad * V_pad + M_pad),  # exp in pass 0 + final log
        bytes_accessed=int(x2.size * jnp.dtype(x.dtype).itemsize
                           + 2 * w.size * jnp.dtype(w.dtype).itemsize
                           + 2 * b.size * 4
                           + M_pad * V_pad * jnp.dtype(out_dtype).itemsize),
    )

    out = pl.pallas_call(
        generator_kernel,
        out_shape=jax.ShapeDtypeStruct((M_pad, V_pad), out_dtype),
        grid_spec=pltpu.PrefetchScalarGridSpec(
            num_scalar_prefetch=0,
            grid=(nm, 2, nv),
            in_specs=[
                # x row tile: block index depends only on i -> stays resident
                # across the pass / vocab axes (no re-DMA).
                pl.BlockSpec((tm, H), lambda i, p, j: (i, 0)),
                # weight vocab tile
                pl.BlockSpec((H, tn), lambda i, p, j: (0, j)),
                # bias vocab tile (f32)
                pl.BlockSpec((1, tn), lambda i, p, j: (0, j)),
            ],
            # Output block only advances during pass 1 (p == 1): each log-prob
            # tile is written back to HBM exactly once, lane-dense.
            out_specs=pl.BlockSpec((tm, tn), lambda i, p, j: (i, j * p)),
            scratch_shapes=[
                pltpu.VMEM((tm, 1), jnp.float32),   # running max -> logsumexp
                pltpu.VMEM((tm, 1), jnp.float32),   # running sum of exp
            ],
        ),
        compiler_params=pltpu.CompilerParams(
            dimension_semantics=("parallel", "arbitrary", "arbitrary"),
            vmem_limit_bytes=vmem_limit,
        ),
        cost_estimate=cost,
    )(x2, w, b)

    return out[:M, :V].reshape(B, T, V)


if __name__ == "__main__":
    # Small shapes implied by the module: hidden_size=32, output_size (vocab)=128.
    B, T, H, V = 2, 8, 32, 128

    key = jax.random.PRNGKey(0)
    kx, kw, kb = jax.random.split(key, 3)

    # PyTorch-like nn.Linear init: U(-1/sqrt(H), 1/sqrt(H)).
    bound = 1.0 / (H ** 0.5)
    weight = jax.random.uniform(kw, (H, V), jnp.float32, -bound, bound)
    bias = jax.random.uniform(kb, (V,), jnp.float32, -bound, bound)
    x = jax.random.normal(kx, (B, T, H), jnp.float32)

    y = jax.block_until_ready(generator_forward(x, weight, bias))
    ref = jax.nn.log_softmax(jnp.einsum("bth,hv->btv", x, weight) + bias, axis=-1)
    assert y.shape == (B, T, V)
    assert jnp.allclose(y, ref, atol=1e-5, rtol=1e-5), "mismatch vs reference"

    # Ragged shapes: exercise the row/vocab padding path (M=15, V=100).
    B2, T2, V2 = 3, 5, 100
    kx2, kw2, kb2 = jax.random.split(jax.random.PRNGKey(1), 3)
    w2 = jax.random.uniform(kw2, (H, V2), jnp.float32, -bound, bound)
    b2 = jax.random.uniform(kb2, (V2,), jnp.float32, -bound, bound)
    x2 = jax.random.normal(kx2, (B2, T2, H), jnp.float32)
    y2 = jax.block_until_ready(generator_forward(x2, w2, b2))
    ref2 = jax.nn.log_softmax(jnp.einsum("bth,hv->btv", x2, w2) + b2, axis=-1)
    assert y2.shape == (B2, T2, V2)
    assert jnp.allclose(y2, ref2, atol=1e-5, rtol=1e-5), "mismatch vs reference (padded)"

    print("KERNEL_OK")
</pallas_src>

<mosaic_0001>
module attributes {stable_mosaic.version = 11 : i64} {
  func.func @generator_kernel(%arg0: i32, %arg1: i32, %arg2: i32, %arg3: memref<16x32xf32, #tpu.memory_space<vmem>>, %arg4: memref<32x128xf32, #tpu.memory_space<vmem>>, %arg5: memref<1x128xf32, #tpu.memory_space<vmem>>, %arg6: memref<16x128xf32, #tpu.memory_space<vmem>>, %arg7: memref<16x1xf32, #tpu.memory_space<vmem>>, %arg8: memref<16x1xf32, #tpu.memory_space<vmem>>) attributes {dimension_semantics = [#tpu.dimension_semantics<parallel>, #tpu.dimension_semantics<arbitrary>, #tpu.dimension_semantics<arbitrary>], iteration_bounds = array<i64: 1, 2, 1>, scalar_prefetch = 0 : i64, scratch_operands = 2 : i64, tpu.core_type = #tpu.core_type<tc>, window_params = [{transform_indices = @transform_0, window_bounds = array<i64: 16, 32>}, {transform_indices = @transform_1, window_bounds = array<i64: 32, 128>}, {transform_indices = @transform_2, window_bounds = array<i64: 1, 128>}, {transform_indices = @transform_3, window_bounds = array<i64: 16, 128>}]} {
    %c0 = arith.constant 0 : index
    %c0_0 = arith.constant 0 : index
    %0 = vector.load %arg3[%c0, %c0_0] : memref<16x32xf32, #tpu.memory_space<vmem>>, vector<16x32xf32>
    %c0_1 = arith.constant 0 : index
    %c0_2 = arith.constant 0 : index
    %1 = vector.load %arg4[%c0_1, %c0_2] : memref<32x128xf32, #tpu.memory_space<vmem>>, vector<32x128xf32>
    %cst = arith.constant dense<0.000000e+00> : vector<16x128xf32>
    %2 = tpu.matmul %0, %1, %cst {dimension_numbers = #tpu.dot_dimension_numbers<[1], [0], [0], [1], [0, 0, 1, 1], [], []>} : vector<16x32xf32>, vector<32x128xf32>, vector<16x128xf32> -> vector<16x128xf32>
    %c0_3 = arith.constant 0 : index
    %c0_4 = arith.constant 0 : index
    %3 = vector.load %arg5[%c0_3, %c0_4] : memref<1x128xf32, #tpu.memory_space<vmem>>, vector<1x128xf32>
    %4 = vector.broadcast %3 : vector<1x128xf32> to vector<16x128xf32>
    %5 = arith.addf %2, %4 : vector<16x128xf32>
    %c0_i32 = arith.constant 0 : i32
    %6 = arith.cmpi eq, %arg1, %c0_i32 : i32
    %c0_i32_5 = arith.constant 0 : i32
    %7 = arith.cmpi eq, %arg2, %c0_i32_5 : i32
    %8 = arith.andi %6, %7 : i1
    %9 = arith.extui %8 : i1 to i32
    %c0_i32_6 = arith.constant 0 : i32
    %10 = arith.cmpi ne, %9, %c0_i32_6 : i32
    scf.if %10 {
      %cst_13 = arith.constant -1.000000e+30 : f32
      %22 = vector.broadcast %cst_13 : f32 to vector<16x1xf32>
      %c0_14 = arith.constant 0 : index
      %c0_15 = arith.constant 0 : index
      %23 = vector.load %arg7[%c0_14, %c0_15] : memref<16x1xf32, #tpu.memory_space<vmem>>, vector<16x1xf32>
      tpu.vector_store %arg7[%c0_14, %c0_15], %22 {strides = array<i32>} : memref<16x1xf32, #tpu.memory_space<vmem>>, vector<16x1xf32>,
      %cst_16 = arith.constant 0.000000e+00 : f32
      %24 = vector.broadcast %cst_16 : f32 to vector<16x1xf32>
      %c0_17 = arith.constant 0 : index
      %c0_18 = arith.constant 0 : index
      %25 = vector.load %arg8[%c0_17, %c0_18] : memref<16x1xf32, #tpu.memory_space<vmem>>, vector<16x1xf32>
      tpu.vector_store %arg8[%c0_17, %c0_18], %24 {strides = array<i32>} : memref<16x1xf32, #tpu.memory_space<vmem>>, vector<16x1xf32>,
    } else {
    }
    %c0_i32_7 = arith.constant 0 : i32
    %11 = arith.cmpi eq, %arg1, %c0_i32_7 : i32
    %12 = arith.extui %11 : i1 to i32
    %c0_i32_8 = arith.constant 0 : i32
    %13 = arith.cmpi ne, %12, %c0_i32_8 : i32
    scf.if %13 {
      %c0_13 = arith.constant 0 : index
      %c0_14 = arith.constant 0 : index
      %22 = vector.load %arg7[%c0_13, %c0_14] : memref<16x1xf32, #tpu.memory_space<vmem>>, vector<16x1xf32>
      %cst_15 = arith.constant dense<0xFF800000> : vector<16xf32>
      %23 = vector.multi_reduction <maximumf>, %5, %cst_15 [1] : vector<16x128xf32> to vector<16xf32>
      %24 = vector.shape_cast %23 : vector<16xf32> to vector<16x1xf32>
      %25 = arith.maximumf %22, %24 : vector<16x1xf32>
      %c0_16 = arith.constant 0 : index
      %c0_17 = arith.constant 0 : index
      %26 = vector.load %arg8[%c0_16, %c0_17] : memref<16x1xf32, #tpu.memory_space<vmem>>, vector<16x1xf32>
      %27 = arith.subf %22, %25 : vector<16x1xf32>
      %28 = math.exp %27 : vector<16x1xf32>
      %29 = arith.mulf %26, %28 : vector<16x1xf32>
      %30 = vector.broadcast %25 : vector<16x1xf32> to vector<16x128xf32>
      %31 = arith.subf %5, %30 : vector<16x128xf32>
      %32 = math.exp %31 : vector<16x128xf32>
      %cst_18 = arith.constant dense<0.000000e+00> : vector<16xf32>
      %33 = vector.multi_reduction <add>, %32, %cst_18 [1] : vector<16x128xf32> to vector<16xf32>
      %34 = vector.shape_cast %33 : vector<16xf32> to vector<16x1xf32>
      %35 = arith.addf %29, %34 : vector<16x1xf32>
      %c0_19 = arith.constant 0 : index
      %c0_20 = arith.constant 0 : index
      %36 = vector.load %arg8[%c0_19, %c0_20] : memref<16x1xf32, #tpu.memory_space<vmem>>, vector<16x1xf32>
      tpu.vector_store %arg8[%c0_19, %c0_20], %35 {strides = array<i32>} : memref<16x1xf32, #tpu.memory_space<vmem>>, vector<16x1xf32>,
      %c0_21 = arith.constant 0 : index
      %c0_22 = arith.constant 0 : index
      %37 = vector.load %arg7[%c0_21, %c0_22] : memref<16x1xf32, #tpu.memory_space<vmem>>, vector<16x1xf32>
      tpu.vector_store %arg7[%c0_21, %c0_22], %25 {strides = array<i32>} : memref<16x1xf32, #tpu.memory_space<vmem>>, vector<16x1xf32>,
    } else {
    }
    %c0_i32_9 = arith.constant 0 : i32
    %14 = arith.cmpi eq, %arg1, %c0_i32_9 : i32
    %c0_i32_10 = arith.constant 0 : i32
    %15 = arith.cmpi eq, %arg2, %c0_i32_10 : i32
    %16 = arith.andi %14, %15 : i1
    %17 = arith.extui %16 : i1 to i32
    %c0_i32_11 = arith.constant 0 : i32
    %18 = arith.cmpi ne, %17, %c0_i32_11 : i32
    scf.if %18 {
      %c0_13 = arith.constant 0 : index
      %c0_14 = arith.constant 0 : index
      %22 = vector.load %arg7[%c0_13, %c0_14] : memref<16x1xf32, #tpu.memory_space<vmem>>, vector<16x1xf32>
      %c0_15 = arith.constant 0 : index
      %c0_16 = arith.constant 0 : index
      %23 = vector.load %arg8[%c0_15, %c0_16] : memref<16x1xf32, #tpu.memory_space<vmem>>, vector<16x1xf32>
      %24 = math.log %23 : vector<16x1xf32>
      %25 = arith.addf %22, %24 : vector<16x1xf32>
      %c0_17 = arith.constant 0 : index
      %c0_18 = arith.constant 0 : index
      %26 = vector.load %arg7[%c0_17, %c0_18] : memref<16x1xf32, #tpu.memory_space<vmem>>, vector<16x1xf32>
      tpu.vector_store %arg7[%c0_17, %c0_18], %25 {strides = array<i32>} : memref<16x1xf32, #tpu.memory_space<vmem>>, vector<16x1xf32>,
    } else {
    }
    %c1_i32 = arith.constant 1 : i32
    %19 = arith.cmpi eq, %arg1, %c1_i32 : i32
    %20 = arith.extui %19 : i1 to i32
    %c0_i32_12 = arith.constant 0 : i32
    %21 = arith.cmpi ne, %20, %c0_i32_12 : i32
    scf.if %21 {
      %c0_13 = arith.constant 0 : index
      %c0_14 = arith.constant 0 : index
      %22 = vector.load %arg7[%c0_13, %c0_14] : memref<16x1xf32, #tpu.memory_space<vmem>>, vector<16x1xf32>
      %23 = vector.broadcast %22 : vector<16x1xf32> to vector<16x128xf32>
      %24 = arith.subf %5, %23 : vector<16x128xf32>
      %c0_15 = arith.constant 0 : index
      %c0_16 = arith.constant 0 : index
      %25 = vector.load %arg6[%c0_15, %c0_16] : memref<16x128xf32, #tpu.memory_space<vmem>>, vector<16x128xf32>
      tpu.vector_store %arg6[%c0_15, %c0_16], %24 {strides = array<i32>} : memref<16x128xf32, #tpu.memory_space<vmem>>, vector<16x128xf32>,
    } else {
    }
    return
  }
  func.func @transform_0(%arg0: i32, %arg1: i32, %arg2: i32) -> (i32, i32) {
    %c0_i32 = arith.constant 0 : i32
    %c0_i32_0 = arith.constant 0 : i32
    return %arg0, %c0_i32 : i32, i32
  }
  func.func @transform_1(%arg0: i32, %arg1: i32, %arg2: i32) -> (i32, i32) {
    %c0_i32 = arith.constant 0 : i32
    %c0_i32_0 = arith.constant 0 : i32
    return %c0_i32, %arg2 : i32, i32
  }
  func.func @transform_2(%arg0: i32, %arg1: i32, %arg2: i32) -> (i32, i32) {
    %c0_i32 = arith.constant 0 : i32
    %c0_i32_0 = arith.constant 0 : i32
    return %c0_i32, %arg2 : i32, i32
  }
  func.func @transform_3(%arg0: i32, %arg1: i32, %arg2: i32) -> (i32, i32) {
    %0 = arith.muli %arg2, %arg1 : i32
    %c0_i32 = arith.constant 0 : i32
    return %arg0, %0 : i32, i32
  }
}

</mosaic_0001>

<llo_original>
// kernel: tpu_custom_call.1
$region0: #{tpu_custom_call.1}
  #allocation0 [shape = 'u32[]', space=smem, size = 0x4, offset = 0x4, fixed_abs, tag = 'smem constant byte address 0x4 - core index']
  #allocation1 [shape = 'u32[144,128]{1,0:T(1,128)}', space=vmem, size = 0x12000, scoped, tag = 'internal scratch']
  #allocation2 [shape = 'f32[16,1]{1,0:T(8,128)}', space=vmem, size = 0x2000, scoped, tag = 'scratch operand']
  #allocation3 [shape = 'f32[16,1]{1,0:T(8,128)}', space=vmem, size = 0x2000, scoped, tag = 'scratch operand']
  %s0 = inlined_call_operand.hbm [shape: f32[16,32], index: 0, kind: input, shape index: {}]
  %s1 = inlined_call_operand.hbm [shape: f32[32,128], index: 1, kind: input, shape index: {}]
  %s2 = inlined_call_operand.vmem [shape: f32[1,128], index: 2, kind: input, shape index: {}]
  %s3 = inlined_call_operand.hbm [shape: f32[16,128], index: 3, kind: output, shape index: {}]
  %s4 = sld [smem:[#allocation0]]
  $region69: #{tpu_custom_call.1} parent=0
    _
  %s6 = ssub.s32 1, %s4
  %s7 = scalar_select 0, %s6, %s4
  $region1: #{tpu_custom_call.1} parent=0
    #allocation4 [shape = 'u8[8192]{0}', space=vmem, size = 0x2000, scoped, tag = 'input window, operand 0, single buffered']
    #allocation5 [shape = 's32[2]{0}', space=sflag, size = 0x8, scoped, tag = 'scoped memory for tpu_custom_call.1']
    #allocation6 [shape = 's32[2]{0}', space=sflag, size = 0x8, scoped, tag = 'scoped memory for tpu_custom_call.1']
    #allocation7 [shape = 'u8[16384]{0}', space=vmem, size = 0x4000, scoped, tag = 'input window, operand 1, single buffered']
    #allocation8 [shape = 's32[1]{0}', space=sflag, size = 0x4, scoped, tag = 'scoped memory for tpu_custom_call.1']
    #allocation9 [shape = 'u8[16384]{0}', space=vmem, size = 0x4000, scoped, tag = 'output window, operand 0']
    %8 = vsyncpa [#allocation5], 0
    %9 = vsyncpa [#allocation8], 0
    %10 = vsyncpa [#allocation6], 0
    %s11 = scalar_lea.sflag [#allocation6], 1
    %12 = vsyncpa %s11, 0
    loop: start=0, step=1, limit=4
    $region2: #{tpu_custom_call.1} parent=1 // loop_pre_header
      _
    $region3: #{tpu_custom_call.1} parent=1 // loop_header
      %s14 = sphi 0, %s18
      %p15 = scmp.ge.s32.totalorder %s14, 4
      %s21 = sphi 0, %s40
      %s22 = sphi 0, %s36
      %s23 = sphi 0, %s32
      %s24 = sphi 0, %s21
      %s25 = sphi 0, %s22
      %s26 = sphi 0, %s23
      %s27 = sphi 0, %s24
      %s28 = sphi 0, %s25
      %s29 = sphi 0, %s26
      %s43 = sphi 0, %s45
      %s46 = sphi 0, %s43
      %s47 = sphi 0, %s46
      %s63 = sphi 0, %s47
      %s69 = sphi 0, %s71
      %s72 = sphi 0, %s69
      %s73 = sphi 0, %s72
      %s89 = sphi 0, %s73
      %s95 = sphi 0, %s97
      %s98 = sphi 0, %s95
      %s99 = sphi 0, %s98
      %s115 = sphi 0, %s99
      %s125 = sphi 0, %s127
      %s128 = sphi 0, %s125
      %s129 = sphi 0, %s128
      %s145 = sphi 0, %s129
    $region4: #{tpu_custom_call.1} parent=1 // loop_header_branch
      %17 = sbr.rel (%p15) target = $region8
    $region5: #{tpu_custom_call.1} parent=1 // loop_body
      %s19 = ssub.s32 %s14, 1
      %s20 = ssub.s32 %s14, 2
      %s30 = sadd.s32 1, %s23
      %p31 = scmp.ge.s32.totalorder %s30, 1
      %s32 = scalar_select %p31, 0, %s30
      %s33 = sadd.s32 1, %s22
      %s34 = scalar_select %p31, %s33, %s22
      %p35 = scmp.ge.s32.totalorder %s34, 2
      %s36 = scalar_select %p35, 0, %s34
      %s37 = sadd.s32 1, %s21
      %s38 = scalar_select %p35, %s37, %s21
      %p39 = scmp.ge.s32.totalorder %s38, 1
      %s40 = scalar_select %p39, 0, %s38
      %s41 = ssub.s32 %s21, %s40
      %p42 = scmp.eq.s32.totalorder %s41, 0
      %s44 = sadd.s32 %s43, 1
      %s45 = scalar_select %p42, %s43, %s44
      %p48 = pneg %p42
      %p49 = scmp.eq.s32.totalorder %s14, 1
      %p50 = por %p48, %p49
      %p51 = scmp.ne.s32.totalorder %s43, %s46
      %p52 = scmp.eq.s32.totalorder %s14, 0
      %p53 = por %p51, %p52
      %p54 = scmp.ne.s32.totalorder %s43, %s46
      %p55 = scmp.eq.s32.totalorder %s19, 1
      %p56 = por %p54, %p55
      %p57 = scmp.ne.s32.totalorder %s46, %s47
      %p58 = scmp.eq.s32.totalorder %s19, 0
      %p59 = por %p57, %p58
      %p60 = scmp.ne.s32.totalorder %s46, %s47
      %p61 = scmp.eq.s32.totalorder %s20, 1
      %p62 = por %p60, %p61
      %p64 = scmp.ne.s32.totalorder %s47, %s63
      %p65 = scmp.eq.s32.totalorder %s20, 0
      %p66 = por %p64, %p65
      %s67 = ssub.s32 %s23, %s32
      %p68 = scmp.eq.s32.totalorder %s67, 0
      %s70 = sadd.s32 %s69, 1
      %s71 = scalar_select %p68, %s69, %s70
      %p74 = pneg %p68
      %p75 = scmp.eq.s32.totalorder %s14, 1
      %p76 = por %p74, %p75
      %p77 = scmp.ne.s32.totalorder %s69, %s72
      %p78 = scmp.eq.s32.totalorder %s14, 0
      %p79 = por %p77, %p78
      %p80 = scmp.ne.s32.totalorder %s69, %s72
      %p81 = scmp.eq.s32.totalorder %s19, 1
      %p82 = por %p80, %p81
      %p83 = scmp.ne.s32.totalorder %s72, %s73
      %p84 = scmp.eq.s32.totalorder %s19, 0
      %p85 = por %p83, %p84
      %p86 = scmp.ne.s32.totalorder %s72, %s73
      %p87 = scmp.eq.s32.totalorder %s20, 1
      %p88 = por %p86, %p87
      %p90 = scmp.ne.s32.totalorder %s73, %s89
      %p91 = scmp.eq.s32.totalorder %s20, 0
      %p92 = por %p90, %p91
      %s93 = ssub.s32 %s23, %s32
      %p94 = scmp.eq.s32.totalorder %s93, 0
      %s96 = sadd.s32 %s95, 1
      %s97 = scalar_select %p94, %s95, %s96
      %p100 = pneg %p94
      %p101 = scmp.eq.s32.totalorder %s14, 1
      %p102 = por %p100, %p101
      %p103 = scmp.ne.s32.totalorder %s95, %s98
      %p104 = scmp.eq.s32.totalorder %s14, 0
      %p105 = por %p103, %p104
      %p106 = scmp.ne.s32.totalorder %s95, %s98
      %p107 = scmp.eq.s32.totalorder %s19, 1
      %p108 = por %p106, %p107
      %p109 = scmp.ne.s32.totalorder %s98, %s99
      %p110 = scmp.eq.s32.totalorder %s19, 0
      %p111 = por %p109, %p110
      %p112 = scmp.ne.s32.totalorder %s98, %s99
      %p113 = scmp.eq.s32.totalorder %s20, 1
      %p114 = por %p112, %p113
      %p116 = scmp.ne.s32.totalorder %s99, %s115
      %p117 = scmp.eq.s32.totalorder %s20, 0
      %p118 = por %p116, %p117
      %s119 = smul.u32 %s23, %s22
      %s120 = smul.u32 %s32, %s36
      %s121 = ssub.s32 %s21, %s40
      %s122 = ssub.s32 %s119, %s120
      %s123 = sor.u32 %s121, %s122
      %p124 = scmp.eq.s32.totalorder %s123, 0
      %s126 = sadd.s32 %s125, 1
      %s127 = scalar_select %p124, %s125, %s126
      %p130 = pneg %p124
      %p131 = scmp.eq.s32.totalorder %s14, 1
      %p132 = por %p130, %p131
      %p133 = scmp.ne.s32.totalorder %s125, %s128
      %p134 = scmp.eq.s32.totalorder %s14, 0
      %p135 = por %p133, %p134
      %p136 = scmp.ne.s32.totalorder %s125, %s128
      %p137 = scmp.eq.s32.totalorder %s19, 1
      %p138 = por %p136, %p137
      %p139 = scmp.ne.s32.totalorder %s128, %s129
      %p140 = scmp.eq.s32.totalorder %s19, 0
      %p141 = por %p139, %p140
      %p142 = scmp.ne.s32.totalorder %s128, %s129
      %p143 = scmp.eq.s32.totalorder %s20, 1
      %p144 = por %p142, %p143
      %p146 = scmp.ne.s32.totalorder %s129, %s145
      %p147 = scmp.eq.s32.totalorder %s20, 0
      %p148 = por %p146, %p147
      %p149 = scmp.le.s32.totalorder 1, %s14
      %p150 = scmp.lt.s32.totalorder %s14, 3
      %p151 = pnand %p149, %p150
      %p152 = pneg %p151
      // Predicated region
      $region9: #{tpu_custom_call.1} parent=5 // pred_check
        _
      $region10: #{tpu_custom_call.1} parent=5 // pred_check_branch
        %154 = sbr.rel (%p151) target = $region12
      $region11: #{tpu_custom_call.1} parent=5 // pred_region
        %s155 = ssub.s32 %s14, 1
        // Predicated region
        $region13: #{tpu_custom_call.1} parent=11 // pred_check
          %p156 = pneg %p59
        $region14: #{tpu_custom_call.1} parent=11 // pred_check_branch
          %158 = sbr.rel (%p156) target = $region16
        $region15: #{tpu_custom_call.1} parent=11 // pred_region
          %s159 = smul.u32 2, %s24
          %s161 = ssub.s32 256, 256
          %162 = vsyncadd [#allocation5], %s161
          %s163 = smul.addr %s159, 128
          %s164 = scalar_lea.hbm %s0, %s163
          %s165 = sshll.u32 [#allocation4], 4
          %s166 = int_to_ptr.vmem [resolvable:$true] %s165
          %171 = dma.hbm_to_vmem [thread:$0]  %s164, 256, %s166, [#allocation5], 128, 128, 8
        $region16: #{tpu_custom_call.1} parent=11 // pred_fallthru
          _
        // Predicated region
        $region17: #{tpu_custom_call.1} parent=11 // pred_check
          %p172 = pneg %p85
        $region18: #{tpu_custom_call.1} parent=11 // pred_check_branch
          %174 = sbr.rel (%p172) target = $region20
        $region19: #{tpu_custom_call.1} parent=11 // pred_region
          %s176 = ssub.s32 512, 512
          %177 = vsyncadd [#allocation8], %s176
          %s178 = smul.addr %s26, 128
          %s179 = scalar_lea.hbm %s1, %s178
          %s180 = sshll.u32 [#allocation7], 4
          %s181 = int_to_ptr.vmem [resolvable:$true] %s180
          %186 = dma.hbm_to_vmem [thread:$0]  %s179, 512, %s181, [#allocation8], 128, 128, 8
        $region20: #{tpu_custom_call.1} parent=11 // pred_fallthru
          _
        // Predicated region
        $region21: #{tpu_custom_call.1} parent=11 // pred_check
          %p187 = pneg %p111
        $region22: #{tpu_custom_call.1} parent=11 // pred_check_branch
          %189 = sbr.rel (%p187) target = $region24
        $region23: #{tpu_custom_call.1} parent=11 // pred_region
          %p190 = scmp.lt.s32.totalorder %s26, 0
          %s191 = scalar_select %p190, %s26, 0
          %s192 = scalar_lea.vmem %s2, %s191
        $region24: #{tpu_custom_call.1} parent=11 // pred_fallthru
          _
      $region12: #{tpu_custom_call.1} parent=5 // pred_fallthru
        _
      %p193 = scmp.lt.s32.totalorder %s14, 2
      // Predicated region
      $region25: #{tpu_custom_call.1} parent=5 // pred_check
        %p194 = pneg %p193
      $region26: #{tpu_custom_call.1} parent=5 // pred_check_branch
        %196 = sbr.rel (%p194) target = $region28
      $region27: #{tpu_custom_call.1} parent=5 // pred_region
        _
      $region28: #{tpu_custom_call.1} parent=5 // pred_fallthru
        _
      %p197 = scmp.le.s32.totalorder 1, %s14
      %p198 = scmp.lt.s32.totalorder %s14, 3
      %p199 = pnand %p197, %p198
      %p200 = pneg %p199
      // Predicated region
      $region29: #{tpu_custom_call.1} parent=5 // pred_check
        _
      $region30: #{tpu_custom_call.1} parent=5 // pred_check_branch
        %202 = sbr.rel (%p199) target = $region32
      $region31: #{tpu_custom_call.1} parent=5 // pred_region
        %s203 = ssub.s32 %s14, 1
        // Predicated region
        $region33: #{tpu_custom_call.1} parent=31 // pred_check
          %p204 = pneg %p59
        $region34: #{tpu_custom_call.1} parent=31 // pred_check_branch
          %206 = sbr.rel (%p204) target = $region36
        $region35: #{tpu_custom_call.1} parent=31 // pred_region
          %207 = dma.done [#allocation5], 256
        $region36: #{tpu_custom_call.1} parent=31 // pred_fallthru
          _
        // Predicated region
        $region37: #{tpu_custom_call.1} parent=31 // pred_check
          %p208 = pneg %p85
        $region38: #{tpu_custom_call.1} parent=31 // pred_check_branch
          %210 = sbr.rel (%p208) target = $region40
        $region39: #{tpu_custom_call.1} parent=31 // pred_region
          %211 = dma.done [#allocation8], 512
        $region40: #{tpu_custom_call.1} parent=31 // pred_fallthru
          _
        %p212 = pneg %p59
        %p213 = pneg %p56
        %p214 = pneg %p85
        %p215 = pneg %p82
        %p216 = scmp.lt.s32.totalorder %s26, 0
        %s217 = scalar_select %p216, %s26, 0
        %s218 = scalar_lea.vmem %s2, %s217
        %p219 = pneg %p111
        %p220 = pneg %p108
        %p221 = pneg %p141
        %p222 = pneg %p138
        %s223 = sand.u32 %s128, 1
        %s224 = scalar_lea.sflag [#allocation6], %s223
        %s225 = sand.u32 %s128, 1
        %s226 = smul.addr %s225, 16
        %s227 = scalar_lea.vmem [#allocation9], %s226
        %s228 = smul.u32 2, %s24
        %p229 = scmp.lt.s32.totalorder %s26, 0
        %s230 = scalar_select %p229, %s26, 0
        %s231 = scalar_lea.vmem %s2, %s230
        %s232 = smul.u32 %s26, %s25
        %s233 = smul.u32 2, %s24
        %v234 = vld [vmem:[#allocation4] sm:$0xff]
        %v235 = vld [vmem:[#allocation4 + $0x8] sm:$0xff]
        %v236 = vld [vmem:[#allocation7] sm:$0xff]
        %v237 = vld [vmem:[#allocation7 + $0x8] sm:$0xff]
        %v238 = vld [vmem:[#allocation7 + $0x10] sm:$0xff]
        %v239 = vld [vmem:[#allocation7 + $0x18] sm:$0xff]
        %v240 = vld [vmem:[%s231] sm:$0x1]
        %v242 = vlaneseq
        %v243 = vshrl.u32 %v242, 7
        %v244 = vsub.s32 0, %v243
        %v245 = vrot.slane %v240, %v244
        %vm247 = vcmask 261120
        %v249 = vsel %vm247, %v234, 0
        %v252 = vsel %vm247, %v235, 0
        %254 = vmatprep.subr.mxu0 0.0
        %255 = vmatpush1.msra.mxu0 %v236
        %256 = vmatprep.subr.mxu0 0.0
        %257 = vmatpush1.msra.mxu0 %v237
        %258 = vmatprep.subr.mxu0 0.0
        %259 = vmatpush1.msra.mxu0 %v238
        %260 = vmatprep.subr.mxu0 0.0
        %261 = vmatpush1.msra.mxu0 %v239
        %262 = vmatprep.subr.mxu0 0.0
        %263 = vmatpush1.msra.mxu0 0.0
        %264 = vmatprep.subr.mxu0 0.0
        %265 = vmatpush1.msra.mxu0 0.0
        %266 = vmatprep.subr.mxu0 0.0
        %267 = vmatpush1.msra.mxu0 0.0
        %268 = vmatprep.subr.mxu0 0.0
        %269 = vmatpush1.msra.mxu0 0.0
        %270 = vmatprep.subr.mxu0 0.0
        %271 = vmatpush1.msra.mxu0 0.0
        %272 = vmatprep.subr.mxu0 0.0
        %273 = vmatpush1.msra.mxu0 0.0
        %274 = vmatprep.subr.mxu0 0.0
        %275 = vmatpush1.msra.mxu0 0.0
        %276 = vmatprep.subr.mxu0 0.0
        %277 = vmatpush1.msra.mxu0 0.0
        %278 = vmatprep.subr.mxu0 0.0
        %279 = vmatpush1.msra.mxu0 0.0
        %280 = vmatprep.subr.mxu0 0.0
        %281 = vmatpush1.msra.mxu0 0.0
        %282 = vmatprep.subr.mxu0 0.0
        %283 = vmatpush1.msra.mxu0 0.0
        %284 = vmatprep.subr.mxu0 0.0
        %285 = vmatpush1.msra.mxu0 0.0
        %286 = vmatprep.subr.mxu0 0.0
        %287 = vmatpush1.msra.mxu0 0.0
        %288 = vmatprep.subr.mxu0 0.0
        %289 = vmatpush1.msra.mxu0 0.0
        %290 = vmatprep.subr.mxu0 0.0
        %291 = vmatpush1.msra.mxu0 0.0
        %292 = vmatprep.subr.mxu0 0.0
        %293 = vmatpush1.msra.mxu0 0.0
        %294 = vmatprep.subr.mxu0 0.0
        %295 = vmatpush1.msra.mxu0 0.0
        %296 = vmatprep.subr.mxu0 0.0
        %297 = vmatpush1.msra.mxu0 0.0
        %298 = vmatprep.subr.mxu0 0.0
        %299 = vmatpush1.msra.mxu0 0.0
        %300 = vmatprep.subr.mxu0 0.0
        %301 = vmatpush1.msra.mxu0 0.0
        %302 = vmatprep.subr.mxu0 0.0
        %303 = vmatpush1.msra.mxu0 0.0
        %304 = vmatprep.subr.mxu0 0.0
        %305 = vmatpush1.msra.mxu0 0.0
        %306 = vmatprep.subr.mxu0 0.0
        %307 = vmatpush1.msra.mxu0 0.0
        %308 = vmatprep.subr.mxu0 0.0
        %309 = vmatpush1.msra.mxu0 0.0
        %310 = vmatprep.subr.mxu0 0.0
        %311 = vmatpush1.msra.mxu0 0.0
        %312 = vmatprep.subr.mxu0 0.0
        %313 = vmatpush1.msra.mxu0 0.0
        %314 = vmatprep.subr.mxu0 0.0
        %315 = vmatpush1.msra.mxu0 0.0
        %316 = vmatprep.subr.mxu0 0.0
        %317 = vmatpush1.msra.mxu0 0.0
        %318 = vmatprep.mubr.f32.mxu0 0.0
        %319 = vmatmul.mubr.f32.gmra.mrb[0].mxu0 %v249
        %v320 = vpop.f32.mrb[0].mxu0
        %v321 = vadd.f32 %v245, %v320
        %v322 = vpop.f32.mrb[0].mxu0
        %323 = vmatprep.mubr.f32.mxu0 0.0
        %324 = vmatmul.mubr.f32.gmra.mrb[0].mxu0 %v252
        %v325 = vpop.f32.mrb[0].mxu0
        %v326 = vadd.f32 %v245, %v325
        %v327 = vpop.f32.mrb[0].mxu0
        %328 = vdwg.mxu0
        %p329 = scmp.eq.s32.totalorder %s25, 0
        %p330 = scmp.eq.s32.totalorder %s26, 0
        %p331 = pnand %p329, %p330
        %p332 = pneg %p331
        // Predicated region
        $region41: #{tpu_custom_call.1} parent=31 // pred_check
          _
        $region42: #{tpu_custom_call.1} parent=31 // pred_check_branch
          %334 = sbr.rel (%p331) target = $region44
        $region43: #{tpu_custom_call.1} parent=31 // pred_region
          %vm335 = vcmask 7168
          %336 = vst.msk [vmem:[#allocation2] sm:$0xff] %vm335, -1e+30
          %337 = vst.msk [vmem:[#allocation2 + $0x8] sm:$0xff] %vm335, -1e+30
          %338 = vst.msk [vmem:[#allocation3] sm:$0xff] %vm335, 0.0
          %339 = vst.msk [vmem:[#allocation3 + $0x8] sm:$0xff] %vm335, 0.0
        $region44: #{tpu_custom_call.1} parent=31 // pred_fallthru
          _
        // Predicated region
        $region45: #{tpu_custom_call.1} parent=31 // pred_check
          %p340 = pneg %p329
        $region46: #{tpu_custom_call.1} parent=31 // pred_check_branch
          %342 = sbr.rel (%p340) target = $region48
        $region47: #{tpu_custom_call.1} parent=31 // pred_region
          %v343 = vld [vmem:[#allocation2] sm:$0xff]
          %v344 = vld [vmem:[#allocation2 + $0x8] sm:$0xff]
          %345 = vmax.xlane.f32.xlu0 %v321
          %v346 = vpop.xlane.xlu0 %345
          %347 = vmax.xlane.f32.xlu0 %v326
          %v348 = vpop.xlane.xlu0 %347
          %v349 = vmax.f32 %v343, %v346
          %v350 = vmax.f32 %v344, %v348
          %v351 = vld [vmem:[#allocation3] sm:$0xff]
          %v352 = vld [vmem:[#allocation3 + $0x8] sm:$0xff]
          %v353 = vsub.f32 %v343, %v349
          %v354 = vsub.f32 %v344, %v350
          %v355 = vmul.f32 %v353, 1.442695
          %v356 = vpow.pop %v355
          %v357 = vmul.f32 %v354, 1.442695
          %v358 = vpow.pop %v357
          %v359 = vmul.f32 %v351, %v356
          %v360 = vmul.f32 %v352, %v358
          %362 = vset.pattern.permute.xlu0 0
          %363 = vperm.xlu0 %362, %v349
          %v364 = vpop.permute.xlu0 %363
          %367 = vset.pattern.permute.xlu0 0
          %368 = vperm.xlu0 %367, %v350
          %v369 = vpop.permute.xlu0 %368
          %v371 = vsub.f32 %v321, %v364
          %v372 = vsub.f32 %v326, %v369
          %v373 = vmul.f32 %v371, 1.442695
          %v374 = vpow.pop %v373
          %v375 = vmul.f32 %v372, 1.442695
          %v376 = vpow.pop %v375
          %377 = vadd.xlane.f32.xlu0 %v374
          %v378 = vpop.xlane.xlu0 %377
          %379 = vadd.xlane.f32.xlu0 %v376
          %v380 = vpop.xlane.xlu0 %379
          %v381 = vadd.f32 %v359, %v378
          %v382 = vadd.f32 %v360, %v380
          %vm383 = vcmask 7168
          %384 = vst.msk [vmem:[#allocation3] sm:$0xff] %vm383, %v381
          %385 = vst.msk [vmem:[#allocation3 + $0x8] sm:$0xff] %vm383, %v382
          %386 = vst.msk [vmem:[#allocation2] sm:$0xff] %vm383, %v349
          %387 = vst.msk [vmem:[#allocation2 + $0x8] sm:$0xff] %vm383, %v350
        $region48: #{tpu_custom_call.1} parent=31 // pred_fallthru
          _
        // Predicated region
        $region49: #{tpu_custom_call.1} parent=31 // pred_check
          _
        $region50: #{tpu_custom_call.1} parent=31 // pred_check_branch
          %389 = sbr.rel (%p331) target = $region52
        $region51: #{tpu_custom_call.1} parent=31 // pred_region
          %v390 = vld [vmem:[#allocation2] sm:$0xff]
          %v391 = vld [vmem:[#allocation2 + $0x8] sm:$0xff]
          %v392 = vld [vmem:[#allocation3] sm:$0xff]
          %v393 = vld [vmem:[#allocation3 + $0x8] sm:$0xff]
          %v394 = vlog2.pop %v392
          %v395 = vmul.f32 %v394, 0.6931472
          %v396 = vlog2.pop %v393
          %v397 = vmul.f32 %v396, 0.6931472
          %v398 = vadd.f32 %v390, %v395
          %v399 = vadd.f32 %v391, %v397
          %vm400 = vcmask 7168
          %401 = vst.msk [vmem:[#allocation2] sm:$0xff] %vm400, %v398
          %402 = vst.msk [vmem:[#allocation2 + $0x8] sm:$0xff] %vm400, %v399
        $region52: #{tpu_custom_call.1} parent=31 // pred_fallthru
          _
        %p403 = scmp.eq.s32.totalorder %s25, 1
        // Predicated region
        $region53: #{tpu_custom_call.1} parent=31 // pred_check
          %p404 = pneg %p403
        $region54: #{tpu_custom_call.1} parent=31 // pred_check_branch
          %406 = sbr.rel (%p404) target = $region56
        $region55: #{tpu_custom_call.1} parent=31 // pred_region
          %v407 = vld [vmem:[#allocation2] sm:$0xff]
          %v408 = vld [vmem:[#allocation2 + $0x8] sm:$0xff]
          %410 = vset.pattern.permute.xlu0 0
          %411 = vperm.xlu0 %410, %v407
          %v412 = vpop.permute.xlu0 %411
          %415 = vset.pattern.permute.xlu0 0
          %416 = vperm.xlu0 %415, %v408
          %v417 = vpop.permute.xlu0 %416
          %v419 = vsub.f32 %v321, %v412
          %v420 = vsub.f32 %v326, %v417
          %421 = vst [vmem:[%s227] sm:$0xff] %v419
          %422 = vst [vmem:[%s227 + $0x8] sm:$0xff] %v420
        $region56: #{tpu_custom_call.1} parent=31 // pred_fallthru
          _
        %s423 = sand.u32 %s128, 1
        %s424 = scalar_lea.sflag [#allocation6], %s423
        %s425 = sand.u32 %s128, 1
        %s426 = smul.addr %s425, 16
        %s427 = scalar_lea.vmem [#allocation9], %s426
        // Predicated region
        $region57: #{tpu_custom_call.1} parent=31 // pred_check
          %p428 = pneg %p138
        $region58: #{tpu_custom_call.1} parent=31 // pred_check_branch
          %430 = sbr.rel (%p428) target = $region60
        $region59: #{tpu_custom_call.1} parent=31 // pred_region
          %s431 = smul.u32 %s26, %s25
          %s432 = smul.u32 2, %s24
          %s434 = ssub.s32 256, 256
          %435 = vsyncadd %s424, %s434
          %s436 = sadd.s32 %s431, %s432
          %s437 = smul.addr %s436, 128
          %s438 = scalar_lea.hbm %s3, %s437
          %s439 = sshll.u32 %s427, 4
          %s440 = int_to_ptr.vmem [resolvable:$true] %s439
          %445 = dma.vmem_to_hbm [thread:$0]  %s440, 256, %s438, %s424, 128, 128, 8
        $region60: #{tpu_custom_call.1} parent=31 // pred_fallthru
          _
      $region32: #{tpu_custom_call.1} parent=5 // pred_fallthru
        _
      %p446 = scmp.le.s32.totalorder 2, %s14
      // Predicated region
      $region61: #{tpu_custom_call.1} parent=5 // pred_check
        %p447 = pneg %p446
      $region62: #{tpu_custom_call.1} parent=5 // pred_check_branch
        %449 = sbr.rel (%p447) target = $region64
      $region63: #{tpu_custom_call.1} parent=5 // pred_region
        %s450 = ssub.s32 %s14, 2
        // Predicated region
        $region65: #{tpu_custom_call.1} parent=63 // pred_check
          %p451 = pneg %p144
        $region66: #{tpu_custom_call.1} parent=63 // pred_check_branch
          %453 = sbr.rel (%p451) target = $region68
        $region67: #{tpu_custom_call.1} parent=63 // pred_region
          %s454 = sand.u32 %s129, 1
          %s455 = scalar_lea.sflag [#allocation6], %s454
          %s456 = sand.u32 %s129, 1
          %s457 = smul.addr %s456, 16
          %s458 = scalar_lea.vmem [#allocation9], %s457
          %459 = dma.done %s455, 256
        $region68: #{tpu_custom_call.1} parent=63 // pred_fallthru
          _
      $region64: #{tpu_custom_call.1} parent=5 // pred_fallthru
        _
    $region6: #{tpu_custom_call.1} parent=1 // loop_footer
      %s18 = sadd.s32 1, %s14
    $region7: #{tpu_custom_call.1} parent=1 // loop_footer_branch
      %13 = sbr.rel target = $region3
    $region8: #{tpu_custom_call.1} parent=1 // loop_exit
      _
    %460 = vsyncpa [#allocation5], 1
    %s461 = scalar_lea.sflag [#allocation5], 1
    %462 = vsyncpa %s461, 1
    %463 = vsyncpa [#allocation8], 1
    %464 = vsyncpa [#allocation6], 1
    %s465 = scalar_lea.sflag [#allocation6], 1
    %466 = vsyncpa %s465, 1

</llo_original>
